<compile_context>
chip_gen: v7x
topology: tpu7x:2x2x1
jax: 0.10.0
libtpu: 0.0.40
codegen_flags: <defaults>
</compile_context>

<pallas_src>
import functools

import jax
import jax.numpy as jnp
from jax.experimental import pallas as pl
from jax.experimental.pallas import tpu as pltpu


def _ntxent_time_kernel(zis_ref, zjs_ref, keep_ref, out_ref,
                        sim_acc, nis_acc, njs_rows_acc, njs_lane_acc, pos_acc,
                        *, inv_temperature, batch_size, row_block, matmul_bf16):
    """One (row-block, D-tile) step; finalizes on the last D step."""
    k = pl.program_id(1)
    nk = pl.num_programs(1)

    @pl.when(k == 0)
    def _init():
        sim_acc[...] = jnp.zeros_like(sim_acc)
        nis_acc[...] = jnp.zeros_like(nis_acc)
        njs_rows_acc[...] = jnp.zeros_like(njs_rows_acc)
        njs_lane_acc[...] = jnp.zeros_like(njs_lane_acc)
        pos_acc[...] = jnp.zeros_like(pos_acc)

    # Cast in-kernel (free on the VPU); wrapper passes the original dtype.
    zis = zis_ref[...].astype(jnp.float32)          # (tb, Dt)  rows of this block
    zjs = zjs_ref[...].astype(jnp.float32)          # (B,  Dt)  all columns

    # Rows of zjs matching this row block (needed for the positive dot and the
    # per-row ||zjs_i|| used by the positives).
    if row_block == batch_size:
        zjs_rows = zjs                               # (tb == B, Dt)
    else:
        row_start = pl.multiple_of(pl.program_id(0) * row_block, row_block)
        zjs_rows = zjs_ref[pl.ds(row_start, row_block), :].astype(jnp.float32)

    # Row-wise partial squared norms and the per-row "positive" dot product
    # (replaces any diag(sim) extraction — fused into this K pass).
    nis_acc[...] += jnp.sum(zis * zis, axis=-1, keepdims=True)            # (tb,1)
    njs_rows_acc[...] += jnp.sum(zjs_rows * zjs_rows, axis=-1, keepdims=True)
    pos_acc[...] += jnp.sum(zis * zjs_rows, axis=-1, keepdims=True)       # (tb,1)

    # Lane-oriented column squared norms: ones(1,Dt) contracted with zjs*zjs on
    # the MXU -> (1, B).  Avoids any sublane<->lane relayout / diag matmul in
    # finalize; cost is 1/B of the main matmul.
    zjs_sq = zjs * zjs
    ones_row = jnp.ones((1, zjs.shape[1]), jnp.float32)
    njs_lane_acc[...] += jax.lax.dot_general(
        ones_row, zjs_sq,
        dimension_numbers=(((1,), (1,)), ((), ())),
        preferred_element_type=jnp.float32)                               # (1, B)

    # Un-normalized similarity partial product on the MXU ("NT" matmul,
    # contraction on the feature/lane axis of both operands).
    if matmul_bf16:
        lhs = zis_ref[...].astype(jnp.bfloat16)
        rhs = zjs_ref[...].astype(jnp.bfloat16)
    else:
        lhs, rhs = zis, zjs
    sim_acc[...] += jax.lax.dot_general(
        lhs, rhs, dimension_numbers=(((1,), (1,)), ((), ())),
        preferred_element_type=jnp.float32)                               # (tb, B)

    @pl.when(k == nk - 1)
    def _finalize():
        eps = 1e-12
        # F.normalize(p=2): x / max(||x||, eps), applied after the reduction.
        inv_nis = 1.0 / jnp.maximum(jnp.sqrt(nis_acc[...]), eps)          # (tb,1)
        inv_njs_rows = 1.0 / jnp.maximum(jnp.sqrt(njs_rows_acc[...]), eps)
        inv_njs_lane = 1.0 / jnp.maximum(jnp.sqrt(njs_lane_acc[...]), eps)  # (1,B)

        # Pure elementwise row/column scaling (no diag matmul, no iota).
        sim_n = sim_acc[...] * inv_nis * inv_njs_lane                     # (tb,B)

        # positives = diag(sim_n) / temperature, from the row-wise dot.
        pos = (pos_acc[...] * inv_nis * inv_njs_rows) * inv_temperature   # (tb,1)

        # Masked exp-sum of negatives; keep was precomputed (int8, 0/1) in the
        # wrapper with exact (1 - eye - mask).bool() semantics.
        keep = keep_ref[...] != 0                                          # (tb,B)
        neg_exp_sum = jnp.sum(
            jnp.where(keep, jnp.exp(sim_n * inv_temperature), 0.0),
            axis=-1, keepdims=True)                                        # (tb,1)

        # Faithful to the PyTorch formulation (unshifted exp).
        exp_pos = jnp.exp(pos)
        out_ref[...] = -jnp.log(exp_pos / (exp_pos + neg_exp_sum))         # (tb,1)


def _choose_tiles(d, batch, in_itemsize):
    """Generation- and scratch-aware tile sizing.

    Returns (row_block, d_tile, d_pad, vmem_limit_bytes).
    """
    try:
        info = pltpu.get_tpu_info()
        phys_vmem = int(getattr(info, "vmem_capacity_bytes", 64 * 1024 * 1024))
    except Exception:
        phys_vmem = 64 * 1024 * 1024  # conservative (v7x-sized) fallback

    if phys_vmem >= 100 * 1024 * 1024:      # v5e / v6e: 128 MiB physical VMEM
        vmem_limit = 96 * 1024 * 1024
    else:                                    # v7x: 64 MiB physical VMEM
        vmem_limit = 48 * 1024 * 1024

    # Row tile: only split rows when B is large (second-TC parallelism / VMEM
    # relief) and the split is exact, so no row padding / masking is needed.
    row_block = batch
    if batch >= 1024:
        for cand in (512, 256, 128):
            if batch % cand == 0:
                row_block = cand
                break

    headroom = 6 * 1024 * 1024                       # Mosaic internal scratch
    scratch_bytes = (row_block * batch + batch + 3 * row_block) * 4
    keep_bytes = 2 * row_block * batch * 1           # double-buffered int8 mask
    avail = vmem_limit - headroom - scratch_bytes - keep_bytes
    per_col_bytes = 2 * (row_block + batch) * in_itemsize   # 2 bufs x (zis+zjs)

    d_cap = max(128, (avail // per_col_bytes) // 128 * 128)
    d_tile = int(min(d_cap, ((d + 127) // 128) * 128))
    d_pad = ((d + d_tile - 1) // d_tile) * d_tile
    return row_block, d_tile, d_pad, vmem_limit


def ntxent_loss_time(zis, zjs, mask, k, *, batch_size, temperature):
    """JAX/Pallas forward mirroring NTXentLoss_time.forward.

    `k` only shapes the intermediate boolean-masked view in PyTorch; the
    masked exp-sum here is identical for any k consistent with `mask`.
    """
    del k
    B = batch_size
    zis2 = zis.reshape(B, -1)          # keep original dtype; cast in-kernel
    zjs2 = zjs.reshape(B, -1)
    D = zis2.shape[1]
    assert zjs2.shape[1] == D

    itemsize = jnp.dtype(zis2.dtype).itemsize
    row_block, d_tile, D_pad, vmem_limit = _choose_tiles(D, B, itemsize)

    # Zero-pad the feature dim up to a multiple of d_tile (lane-dense vregs,
    # maximal DMAs).  Zero columns change neither norms nor similarities.
    if D_pad != D:
        zis2 = jnp.pad(zis2, ((0, 0), (0, D_pad - D)))
        zjs2 = jnp.pad(zjs2, ((0, 0), (0, D_pad - D)))

    # Combined keep mask, computed once outside the kernel as int8 — faithful
    # to the PyTorch (1 - eye - mask).bool() semantics (incl. mask-on-diag).
    keep = ((1.0 - jnp.eye(B, dtype=jnp.float32) -
             mask.astype(jnp.float32)) != 0.0).astype(jnp.int8)

    nk = D_pad // d_tile
    n_rows = B // row_block
    matmul_bf16 = bool(B >= 256 or zis2.dtype == jnp.bfloat16)

    kernel = functools.partial(
        _ntxent_time_kernel,
        inv_temperature=float(1.0 / temperature),
        batch_size=B,
        row_block=row_block,
        matmul_bf16=matmul_bf16)

    # TODO(synk): for very large B (B^2*4 bytes approaching VMEM), stream the
    # zjs/keep columns with a running masked exp-sum (flash-softmax style) so
    # the full (row_block, B) similarity tile never has to live in VMEM.
    out = pl.pallas_call(
        kernel,
        out_shape=jax.ShapeDtypeStruct((B, 1), jnp.float32),
        grid=(n_rows, nk),
        in_specs=[
            pl.BlockSpec((row_block, d_tile), lambda r, kk: (r, kk)),   # zis
            pl.BlockSpec((B, d_tile), lambda r, kk: (0, kk)),           # zjs
            pl.BlockSpec((row_block, B), lambda r, kk: (r, 0)),         # keep
        ],
        out_specs=pl.BlockSpec((row_block, 1), lambda r, kk: (r, 0)),
        scratch_shapes=[
            pltpu.VMEM((row_block, B), jnp.float32),  # similarity accumulator
            pltpu.VMEM((row_block, 1), jnp.float32),  # ||zis||^2 (rows)
            pltpu.VMEM((row_block, 1), jnp.float32),  # ||zjs||^2 (block rows)
            pltpu.VMEM((1, B), jnp.float32),          # ||zjs||^2 (lane-oriented)
            pltpu.VMEM((row_block, 1), jnp.float32),  # positives accumulator
        ],
        compiler_params=pltpu.CompilerParams(
            dimension_semantics=("parallel", "arbitrary"),
            vmem_limit_bytes=vmem_limit),
    )(zis2, zjs2, keep)
    return jnp.sum(out) / B


def ntxent_loss_time_ref(zis, zjs, mask, k, *, batch_size, temperature):
    """Pure-JAX reference replicating the PyTorch forward exactly."""
    B = batch_size
    zis = zis.reshape(B, -1).astype(jnp.float32)
    zjs = zjs.reshape(B, -1).astype(jnp.float32)
    zis1 = zis / jnp.maximum(jnp.linalg.norm(zis, axis=-1, keepdims=True), 1e-12)
    zjs1 = zjs / jnp.maximum(jnp.linalg.norm(zjs, axis=-1, keepdims=True), 1e-12)
    sim = zis1 @ zjs1.T
    pos = jnp.diag(sim)[:, None] / temperature
    keep = (1.0 - jnp.eye(B) - mask) != 0.0
    neg_exp = jnp.where(keep, jnp.exp(sim / temperature), 0.0)
    loss = -jnp.log(jnp.exp(pos) /
                    (jnp.exp(pos) + jnp.sum(neg_exp, axis=-1, keepdims=True)))
    return jnp.sum(loss) / B


if __name__ == "__main__":
    # Small shapes consistent with the module: batch=8, channels=4, time=16.
    B, C, T = 8, 4, 16
    temperature = 0.5
    k = 1

    key = jax.random.PRNGKey(0)
    k1, k2 = jax.random.split(key)
    zis = jax.random.normal(k1, (B, C, T), dtype=jnp.float32)
    zjs = jax.random.normal(k2, (B, C, T), dtype=jnp.float32)

    # mask: k=1 off-diagonal "excluded" entry per row (0/1 float matrix).
    idx = (jnp.arange(B) + 1) % B
    mask = jnp.zeros((B, B), dtype=jnp.float32).at[jnp.arange(B), idx].set(1.0)

    out = ntxent_loss_time(zis, zjs, mask, k,
                           batch_size=B, temperature=temperature)
    out = jax.block_until_ready(out)

    ref = ntxent_loss_time_ref(zis, zjs, mask, k,
                               batch_size=B, temperature=temperature)
    assert jnp.allclose(out, ref, rtol=2e-4, atol=1e-5), (out, ref)

    print("KERNEL_OK")
</pallas_src>

<mosaic_0001>
module attributes {stable_mosaic.version = 11 : i64} {
  func.func @_ntxent_time_kernel(%arg0: i32, %arg1: i32, %arg2: memref<8x128xf32, #tpu.memory_space<vmem>>, %arg3: memref<8x128xf32, #tpu.memory_space<vmem>>, %arg4: memref<8x8xi8, #tpu.memory_space<vmem>>, %arg5: memref<8x1xf32, #tpu.memory_space<vmem>>, %arg6: memref<8x8xf32, #tpu.memory_space<vmem>>, %arg7: memref<8x1xf32, #tpu.memory_space<vmem>>, %arg8: memref<8x1xf32, #tpu.memory_space<vmem>>, %arg9: memref<1x8xf32, #tpu.memory_space<vmem>>, %arg10: memref<8x1xf32, #tpu.memory_space<vmem>>) attributes {dimension_semantics = [#tpu.dimension_semantics<parallel>, #tpu.dimension_semantics<arbitrary>], iteration_bounds = array<i64: 1, 1>, scalar_prefetch = 0 : i64, scratch_operands = 5 : i64, tpu.core_type = #tpu.core_type<tc>, window_params = [{transform_indices = @transform_0, window_bounds = array<i64: 8, 128>}, {transform_indices = @transform_1, window_bounds = array<i64: 8, 128>}, {transform_indices = @transform_2, window_bounds = array<i64: 8, 8>}, {transform_indices = @transform_3, window_bounds = array<i64: 8, 1>}]} {
    %c0_i32 = arith.constant 0 : i32
    %0 = arith.cmpi eq, %arg1, %c0_i32 : i32
    %1 = arith.extui %0 : i1 to i32
    %c0_i32_0 = arith.constant 0 : i32
    %2 = arith.cmpi ne, %1, %c0_i32_0 : i32
    scf.if %2 {
      %cst_31 = arith.constant 0.000000e+00 : f32
      %36 = vector.broadcast %cst_31 : f32 to vector<8x8xf32>
      %c0_32 = arith.constant 0 : index
      %c0_33 = arith.constant 0 : index
      %37 = vector.load %arg6[%c0_32, %c0_33] : memref<8x8xf32, #tpu.memory_space<vmem>>, vector<8x8xf32>
      tpu.vector_store %arg6[%c0_32, %c0_33], %36 {strides = array<i32>} : memref<8x8xf32, #tpu.memory_space<vmem>>, vector<8x8xf32>,
      %cst_34 = arith.constant 0.000000e+00 : f32
      %38 = vector.broadcast %cst_34 : f32 to vector<8x1xf32>
      %c0_35 = arith.constant 0 : index
      %c0_36 = arith.constant 0 : index
      %39 = vector.load %arg7[%c0_35, %c0_36] : memref<8x1xf32, #tpu.memory_space<vmem>>, vector<8x1xf32>
      tpu.vector_store %arg7[%c0_35, %c0_36], %38 {strides = array<i32>} : memref<8x1xf32, #tpu.memory_space<vmem>>, vector<8x1xf32>,
      %cst_37 = arith.constant 0.000000e+00 : f32
      %40 = vector.broadcast %cst_37 : f32 to vector<8x1xf32>
      %c0_38 = arith.constant 0 : index
      %c0_39 = arith.constant 0 : index
      %41 = vector.load %arg8[%c0_38, %c0_39] : memref<8x1xf32, #tpu.memory_space<vmem>>, vector<8x1xf32>
      tpu.vector_store %arg8[%c0_38, %c0_39], %40 {strides = array<i32>} : memref<8x1xf32, #tpu.memory_space<vmem>>, vector<8x1xf32>,
      %cst_40 = arith.constant 0.000000e+00 : f32
      %42 = vector.broadcast %cst_40 : f32 to vector<1x8xf32>
      %c0_41 = arith.constant 0 : index
      %c0_42 = arith.constant 0 : index
      %43 = vector.load %arg9[%c0_41, %c0_42] : memref<1x8xf32, #tpu.memory_space<vmem>>, vector<1x8xf32>
      tpu.vector_store %arg9[%c0_41, %c0_42], %42 {strides = array<i32>} : memref<1x8xf32, #tpu.memory_space<vmem>>, vector<1x8xf32>,
      %cst_43 = arith.constant 0.000000e+00 : f32
      %44 = vector.broadcast %cst_43 : f32 to vector<8x1xf32>
      %c0_44 = arith.constant 0 : index
      %c0_45 = arith.constant 0 : index
      %45 = vector.load %arg10[%c0_44, %c0_45] : memref<8x1xf32, #tpu.memory_space<vmem>>, vector<8x1xf32>
      tpu.vector_store %arg10[%c0_44, %c0_45], %44 {strides = array<i32>} : memref<8x1xf32, #tpu.memory_space<vmem>>, vector<8x1xf32>,
    } else {
    }
    %c0 = arith.constant 0 : index
    %c0_1 = arith.constant 0 : index
    %3 = vector.load %arg2[%c0, %c0_1] : memref<8x128xf32, #tpu.memory_space<vmem>>, vector<8x128xf32>
    %c0_2 = arith.constant 0 : index
    %c0_3 = arith.constant 0 : index
    %4 = vector.load %arg3[%c0_2, %c0_3] : memref<8x128xf32, #tpu.memory_space<vmem>>, vector<8x128xf32>
    %c0_4 = arith.constant 0 : index
    %c0_5 = arith.constant 0 : index
    %5 = vector.load %arg7[%c0_4, %c0_5] : memref<8x1xf32, #tpu.memory_space<vmem>>, vector<8x1xf32>
    %6 = arith.mulf %3, %3 : vector<8x128xf32>
    %cst = arith.constant dense<0.000000e+00> : vector<8xf32>
    %7 = vector.multi_reduction <add>, %6, %cst [1] : vector<8x128xf32> to vector<8xf32>
    %8 = vector.shape_cast %7 : vector<8xf32> to vector<8x1xf32>
    %9 = arith.addf %5, %8 : vector<8x1xf32>
    %c0_6 = arith.constant 0 : index
    %c0_7 = arith.constant 0 : index
    %10 = vector.load %arg7[%c0_6, %c0_7] : memref<8x1xf32, #tpu.memory_space<vmem>>, vector<8x1xf32>
    tpu.vector_store %arg7[%c0_6, %c0_7], %9 {strides = array<i32>} : memref<8x1xf32, #tpu.memory_space<vmem>>, vector<8x1xf32>,
    %c0_8 = arith.constant 0 : index
    %c0_9 = arith.constant 0 : index
    %11 = vector.load %arg8[%c0_8, %c0_9] : memref<8x1xf32, #tpu.memory_space<vmem>>, vector<8x1xf32>
    %12 = arith.mulf %4, %4 : vector<8x128xf32>
    %cst_10 = arith.constant dense<0.000000e+00> : vector<8xf32>
    %13 = vector.multi_reduction <add>, %12, %cst_10 [1] : vector<8x128xf32> to vector<8xf32>
    %14 = vector.shape_cast %13 : vector<8xf32> to vector<8x1xf32>
    %15 = arith.addf %11, %14 : vector<8x1xf32>
    %c0_11 = arith.constant 0 : index
    %c0_12 = arith.constant 0 : index
    %16 = vector.load %arg8[%c0_11, %c0_12] : memref<8x1xf32, #tpu.memory_space<vmem>>, vector<8x1xf32>
    tpu.vector_store %arg8[%c0_11, %c0_12], %15 {strides = array<i32>} : memref<8x1xf32, #tpu.memory_space<vmem>>, vector<8x1xf32>,
    %c0_13 = arith.constant 0 : index
    %c0_14 = arith.constant 0 : index
    %17 = vector.load %arg10[%c0_13, %c0_14] : memref<8x1xf32, #tpu.memory_space<vmem>>, vector<8x1xf32>
    %18 = arith.mulf %3, %4 : vector<8x128xf32>
    %cst_15 = arith.constant dense<0.000000e+00> : vector<8xf32>
    %19 = vector.multi_reduction <add>, %18, %cst_15 [1] : vector<8x128xf32> to vector<8xf32>
    %20 = vector.shape_cast %19 : vector<8xf32> to vector<8x1xf32>
    %21 = arith.addf %17, %20 : vector<8x1xf32>
    %c0_16 = arith.constant 0 : index
    %c0_17 = arith.constant 0 : index
    %22 = vector.load %arg10[%c0_16, %c0_17] : memref<8x1xf32, #tpu.memory_space<vmem>>, vector<8x1xf32>
    tpu.vector_store %arg10[%c0_16, %c0_17], %21 {strides = array<i32>} : memref<8x1xf32, #tpu.memory_space<vmem>>, vector<8x1xf32>,
    %23 = arith.mulf %4, %4 : vector<8x128xf32>
    %cst_18 = arith.constant 1.000000e+00 : f32
    %24 = vector.broadcast %cst_18 : f32 to vector<1x128xf32>
    %c0_19 = arith.constant 0 : index
    %c0_20 = arith.constant 0 : index
    %25 = vector.load %arg9[%c0_19, %c0_20] : memref<1x8xf32, #tpu.memory_space<vmem>>, vector<1x8xf32>
    %cst_21 = arith.constant dense<0.000000e+00> : vector<1x8xf32>
    %26 = tpu.matmul %24, %23, %cst_21 {dimension_numbers = #tpu.dot_dimension_numbers<[1], [1], [0], [0], [0, 0, 1, 0], [], []>} : vector<1x128xf32>, vector<8x128xf32>, vector<1x8xf32> -> vector<1x8xf32>
    %27 = arith.addf %25, %26 : vector<1x8xf32>
    %c0_22 = arith.constant 0 : index
    %c0_23 = arith.constant 0 : index
    %28 = vector.load %arg9[%c0_22, %c0_23] : memref<1x8xf32, #tpu.memory_space<vmem>>, vector<1x8xf32>
    tpu.vector_store %arg9[%c0_22, %c0_23], %27 {strides = array<i32>} : memref<1x8xf32, #tpu.memory_space<vmem>>, vector<1x8xf32>,
    %c0_24 = arith.constant 0 : index
    %c0_25 = arith.constant 0 : index
    %29 = vector.load %arg6[%c0_24, %c0_25] : memref<8x8xf32, #tpu.memory_space<vmem>>, vector<8x8xf32>
    %cst_26 = arith.constant dense<0.000000e+00> : vector<8x8xf32>
    %30 = tpu.matmul %3, %4, %cst_26 {dimension_numbers = #tpu.dot_dimension_numbers<[1], [1], [0], [0], [0, 0, 1, 0], [], []>} : vector<8x128xf32>, vector<8x128xf32>, vector<8x8xf32> -> vector<8x8xf32>
    %31 = arith.addf %29, %30 : vector<8x8xf32>
    %c0_27 = arith.constant 0 : index
    %c0_28 = arith.constant 0 : index
    %32 = vector.load %arg6[%c0_27, %c0_28] : memref<8x8xf32, #tpu.memory_space<vmem>>, vector<8x8xf32>
    tpu.vector_store %arg6[%c0_27, %c0_28], %31 {strides = array<i32>} : memref<8x8xf32, #tpu.memory_space<vmem>>, vector<8x8xf32>,
    %c0_i32_29 = arith.constant 0 : i32
    %33 = arith.cmpi eq, %arg1, %c0_i32_29 : i32
    %34 = arith.extui %33 : i1 to i32
    %c0_i32_30 = arith.constant 0 : i32
    %35 = arith.cmpi ne, %34, %c0_i32_30 : i32
    scf.if %35 {
      %c0_31 = arith.constant 0 : index
      %c0_32 = arith.constant 0 : index
      %36 = vector.load %arg7[%c0_31, %c0_32] : memref<8x1xf32, #tpu.memory_space<vmem>>, vector<8x1xf32>
      %37 = math.sqrt %36 : vector<8x1xf32>
      %cst_33 = arith.constant 9.99999996E-13 : f32
      %38 = vector.broadcast %cst_33 : f32 to vector<8x1xf32>
      %39 = arith.maximumf %37, %38 : vector<8x1xf32>
      %cst_34 = arith.constant 1.000000e+00 : f32
      %40 = vector.broadcast %cst_34 : f32 to vector<8x1xf32>
      %41 = arith.divf %40, %39 : vector<8x1xf32>
      %c0_35 = arith.constant 0 : index
      %c0_36 = arith.constant 0 : index
      %42 = vector.load %arg8[%c0_35, %c0_36] : memref<8x1xf32, #tpu.memory_space<vmem>>, vector<8x1xf32>
      %43 = math.sqrt %42 : vector<8x1xf32>
      %cst_37 = arith.constant 9.99999996E-13 : f32
      %44 = vector.broadcast %cst_37 : f32 to vector<8x1xf32>
      %45 = arith.maximumf %43, %44 : vector<8x1xf32>
      %cst_38 = arith.constant 1.000000e+00 : f32
      %46 = vector.broadcast %cst_38 : f32 to vector<8x1xf32>
      %47 = arith.divf %46, %45 : vector<8x1xf32>
      %c0_39 = arith.constant 0 : index
      %c0_40 = arith.constant 0 : index
      %48 = vector.load %arg9[%c0_39, %c0_40] : memref<1x8xf32, #tpu.memory_space<vmem>>, vector<1x8xf32>
      %49 = math.sqrt %48 : vector<1x8xf32>
      %cst_41 = arith.constant 9.99999996E-13 : f32
      %50 = vector.broadcast %cst_41 : f32 to vector<1x8xf32>
      %51 = arith.maximumf %49, %50 : vector<1x8xf32>
      %cst_42 = arith.constant 1.000000e+00 : f32
      %52 = vector.broadcast %cst_42 : f32 to vector<1x8xf32>
      %53 = arith.divf %52, %51 : vector<1x8xf32>
      %c0_43 = arith.constant 0 : index
      %c0_44 = arith.constant 0 : index
      %54 = vector.load %arg6[%c0_43, %c0_44] : memref<8x8xf32, #tpu.memory_space<vmem>>, vector<8x8xf32>
      %55 = vector.broadcast %41 : vector<8x1xf32> to vector<8x8xf32>
      %56 = arith.mulf %54, %55 : vector<8x8xf32>
      %57 = vector.broadcast %53 : vector<1x8xf32> to vector<8x8xf32>
      %58 = arith.mulf %56, %57 : vector<8x8xf32>
      %c0_45 = arith.constant 0 : index
      %c0_46 = arith.constant 0 : index
      %59 = vector.load %arg10[%c0_45, %c0_46] : memref<8x1xf32, #tpu.memory_space<vmem>>, vector<8x1xf32>
      %60 = arith.mulf %59, %41 : vector<8x1xf32>
      %61 = arith.mulf %60, %47 : vector<8x1xf32>
      %cst_47 = arith.constant 2.000000e+00 : f32
      %62 = vector.broadcast %cst_47 : f32 to vector<8x1xf32>
      %63 = arith.mulf %61, %62 : vector<8x1xf32>
      %c0_48 = arith.constant 0 : index
      %c0_49 = arith.constant 0 : index
      %64 = vector.load %arg4[%c0_48, %c0_49] : memref<8x8xi8, #tpu.memory_space<vmem>>, vector<8x8xi8>
      %c0_i8 = arith.constant 0 : i8
      %65 = vector.broadcast %c0_i8 : i8 to vector<8x8xi8>
      %66 = arith.cmpi ne, %64, %65 : vector<8x8xi8>
      %cst_50 = arith.constant 2.000000e+00 : f32
      %67 = vector.broadcast %cst_50 : f32 to vector<8x8xf32>
      %68 = arith.mulf %58, %67 : vector<8x8xf32>
      %69 = math.exp %68 : vector<8x8xf32>
      %cst_51 = arith.constant 0.000000e+00 : f32
      %70 = vector.broadcast %cst_51 : f32 to vector<8x8xf32>
      %71 = arith.select %66, %69, %70 : vector<8x8xi1>, vector<8x8xf32>
      %cst_52 = arith.constant dense<0.000000e+00> : vector<8xf32>
      %72 = vector.multi_reduction <add>, %71, %cst_52 [1] : vector<8x8xf32> to vector<8xf32>
      %73 = vector.shape_cast %72 : vector<8xf32> to vector<8x1xf32>
      %74 = math.exp %63 : vector<8x1xf32>
      %75 = arith.addf %74, %73 : vector<8x1xf32>
      %76 = arith.divf %74, %75 : vector<8x1xf32>
      %77 = math.log %76 : vector<8x1xf32>
      %cst_53 = arith.constant 0.000000e+00 : f32
      %78 = vector.broadcast %cst_53 : f32 to vector<8x1xf32>
      %79 = arith.subf %78, %77 : vector<8x1xf32>
      %c0_54 = arith.constant 0 : index
      %c0_55 = arith.constant 0 : index
      %80 = vector.load %arg5[%c0_54, %c0_55] : memref<8x1xf32, #tpu.memory_space<vmem>>, vector<8x1xf32>
      tpu.vector_store %arg5[%c0_54, %c0_55], %79 {strides = array<i32>} : memref<8x1xf32, #tpu.memory_space<vmem>>, vector<8x1xf32>,
    } else {
    }
    return
  }
  func.func @transform_0(%arg0: i32, %arg1: i32) -> (i32, i32) {
    %c0_i32 = arith.constant 0 : i32
    return %arg0, %arg1 : i32, i32
  }
  func.func @transform_1(%arg0: i32, %arg1: i32) -> (i32, i32) {
    %c0_i32 = arith.constant 0 : i32
    %c0_i32_0 = arith.constant 0 : i32
    return %c0_i32, %arg1 : i32, i32
  }
  func.func @transform_2(%arg0: i32, %arg1: i32) -> (i32, i32) {
    %c0_i32 = arith.constant 0 : i32
    %c0_i32_0 = arith.constant 0 : i32
    return %arg0, %c0_i32 : i32, i32
  }
  func.func @transform_3(%arg0: i32, %arg1: i32) -> (i32, i32) {
    %c0_i32 = arith.constant 0 : i32
    %c0_i32_0 = arith.constant 0 : i32
    return %arg0, %c0_i32 : i32, i32
  }
}

</mosaic_0001>

<llo_original>
// kernel: tpu_custom_call.1
$region0: #{tpu_custom_call.1}
  #allocation0 [shape = 'u32[]', space=smem, size = 0x4, offset = 0x4, fixed_abs, tag = 'smem constant byte address 0x4 - core index']
  #allocation1 [shape = 'u32[144,128]{1,0:T(1,128)}', space=vmem, size = 0x12000, scoped, tag = 'internal scratch']
  #allocation2 [shape = 'f32[8,8]{1,0:T(8,128)}', space=vmem, size = 0x1000, scoped, tag = 'scratch operand']
  #allocation3 [shape = 'f32[8,1]{1,0:T(8,128)}', space=vmem, size = 0x1000, scoped, tag = 'scratch operand']
  #allocation4 [shape = 'f32[8,1]{1,0:T(8,128)}', space=vmem, size = 0x1000, scoped, tag = 'scratch operand']
  #allocation5 [shape = 'f32[1,8]{1,0:T(1,128)}', space=vmem, size = 0x200, scoped, tag = 'scratch operand']
  #allocation6 [shape = 'f32[8,1]{1,0:T(8,128)}', space=vmem, size = 0x1000, scoped, tag = 'scratch operand']
  %s0 = inlined_call_operand.hbm [shape: f32[8,128], index: 0, kind: input, shape index: {}]
  %s1 = inlined_call_operand.hbm [shape: f32[8,128], index: 1, kind: input, shape index: {}]
  %s2 = inlined_call_operand.vmem [shape: s8[8,8], index: 2, kind: input, shape index: {}]
  %s3 = inlined_call_operand.vmem [shape: f32[8,1], index: 3, kind: output, shape index: {}]
  %s4 = sld [smem:[#allocation0]]
  $region38: #{tpu_custom_call.1} parent=0
    _
  %s6 = ssub.s32 1, %s4
  %s7 = scalar_select 0, %s6, %s4
  $region1: #{tpu_custom_call.1} parent=0
    #allocation7 [shape = 'u8[4096]{0}', space=vmem, size = 0x1000, scoped, tag = 'input window, operand 0, single buffered']
    #allocation8 [shape = 's32[1]{0}', space=sflag, size = 0x4, scoped, tag = 'scoped memory for tpu_custom_call.1']
    #allocation9 [shape = 'u8[4096]{0}', space=vmem, size = 0x1000, scoped, tag = 'input window, operand 1, single buffered']
    #allocation10 [shape = 's32[1]{0}', space=sflag, size = 0x4, scoped, tag = 'scoped memory for tpu_custom_call.1']
    %8 = vsyncpa [#allocation8], 0
    %9 = vsyncpa [#allocation10], 0
    // Predicated region
    $region2: #{tpu_custom_call.1} parent=1 // pred_check
      _
    $region3: #{tpu_custom_call.1} parent=1 // pred_check_branch
      %11 = sbr.rel (0) target = $region5
    $region4: #{tpu_custom_call.1} parent=1 // pred_region
      %s13 = ssub.s32 128, 128
      %14 = vsyncadd [#allocation8], %s13
      %s16 = sshll.u32 [#allocation7], 4
      %s17 = int_to_ptr.vmem [resolvable:$true] %s16
      %19 = dma.hbm_to_vmem [thread:$0]  %s0, 128, %s17, [#allocation8]
    $region5: #{tpu_custom_call.1} parent=1 // pred_fallthru
      _
    // Predicated region
    $region6: #{tpu_custom_call.1} parent=1 // pred_check
      _
    $region7: #{tpu_custom_call.1} parent=1 // pred_check_branch
      %21 = sbr.rel (0) target = $region9
    $region8: #{tpu_custom_call.1} parent=1 // pred_region
      %s23 = ssub.s32 128, 128
      %24 = vsyncadd [#allocation10], %s23
      %s26 = sshll.u32 [#allocation9], 4
      %s27 = int_to_ptr.vmem [resolvable:$true] %s26
      %29 = dma.hbm_to_vmem [thread:$0]  %s1, 128, %s27, [#allocation10]
    $region9: #{tpu_custom_call.1} parent=1 // pred_fallthru
      _
    // Predicated region
    $region10: #{tpu_custom_call.1} parent=1 // pred_check
      _
    $region11: #{tpu_custom_call.1} parent=1 // pred_check_branch
      %31 = sbr.rel (0) target = $region13
    $region12: #{tpu_custom_call.1} parent=1 // pred_region
      _
    $region13: #{tpu_custom_call.1} parent=1 // pred_fallthru
      _
    // Predicated region
    $region14: #{tpu_custom_call.1} parent=1 // pred_check
      _
    $region15: #{tpu_custom_call.1} parent=1 // pred_check_branch
      %33 = sbr.rel (0) target = $region17
    $region16: #{tpu_custom_call.1} parent=1 // pred_region
      %34 = dma.done [#allocation8], 128
    $region17: #{tpu_custom_call.1} parent=1 // pred_fallthru
      _
    // Predicated region
    $region18: #{tpu_custom_call.1} parent=1 // pred_check
      _
    $region19: #{tpu_custom_call.1} parent=1 // pred_check_branch
      %36 = sbr.rel (0) target = $region21
    $region20: #{tpu_custom_call.1} parent=1 // pred_region
      %37 = dma.done [#allocation10], 128
    $region21: #{tpu_custom_call.1} parent=1 // pred_fallthru
      _
    %p40 = scmp.eq.s32.totalorder 0, 0
    // Predicated region
    $region22: #{tpu_custom_call.1} parent=1 // pred_check
      %p41 = pneg %p40
    $region23: #{tpu_custom_call.1} parent=1 // pred_check_branch
      %43 = sbr.rel (%p41) target = $region25
    $region24: #{tpu_custom_call.1} parent=1 // pred_region
      %vm44 = vcmask 64512
      %45 = vst.msk [vmem:[#allocation2] sm:$0xff] %vm44, 0.0
      %vm46 = vcmask 7168
      %47 = vst.msk [vmem:[#allocation3] sm:$0xff] %vm46, 0.0
      %48 = vst.msk [vmem:[#allocation4] sm:$0xff] %vm46, 0.0
      %vm49 = vcmask 57344
      %50 = vst.msk [vmem:[#allocation5] sm:$0x1] %vm49, 0.0
      %51 = vst.msk [vmem:[#allocation6] sm:$0xff] %vm46, 0.0
    $region25: #{tpu_custom_call.1} parent=1 // pred_fallthru
      _
    %v52 = vld [vmem:[#allocation7] sm:$0xff]
    %v53 = vld [vmem:[#allocation9] sm:$0xff]
    %v54 = vld [vmem:[#allocation3] sm:$0xff]
    %v55 = vmul.f32 %v52, %v52
    %56 = vadd.xlane.f32.xlu0 %v55
    %v57 = vpop.xlane.xlu0 %56
    %v58 = vadd.f32 %v54, %v57
    %vm59 = vcmask 7168
    %60 = vst.msk [vmem:[#allocation3] sm:$0xff] %vm59, %v58
    %v61 = vld [vmem:[#allocation4] sm:$0xff]
    %v62 = vmul.f32 %v53, %v53
    %63 = vadd.xlane.f32.xlu0 %v62
    %v64 = vpop.xlane.xlu0 %63
    %v65 = vadd.f32 %v61, %v64
    %66 = vst.msk [vmem:[#allocation4] sm:$0xff] %vm59, %v65
    %v67 = vld [vmem:[#allocation6] sm:$0xff]
    %v68 = vmul.f32 %v52, %v53
    %69 = vadd.xlane.f32.xlu0 %v68
    %v70 = vpop.xlane.xlu0 %69
    %v71 = vadd.f32 %v67, %v70
    %72 = vst.msk [vmem:[#allocation6] sm:$0xff] %vm59, %v71
    %v73 = vld [vmem:[#allocation5] sm:$0x1]
    %74 = vmatprep.subr.mxu0 0.0
    %75 = vmatpush1.xpose.msra.mxu0 %v62
    %76 = vmatprep.subr.mxu0 0.0
    %77 = vmatpush1.xpose.msra.mxu0 0.0
    %78 = vmatprep.subr.mxu0 0.0
    %79 = vmatpush1.xpose.msra.mxu0 0.0
    %80 = vmatprep.subr.mxu0 0.0
    %81 = vmatpush1.xpose.msra.mxu0 0.0
    %82 = vmatprep.subr.mxu0 0.0
    %83 = vmatpush1.xpose.msra.mxu0 0.0
    %84 = vmatprep.subr.mxu0 0.0
    %85 = vmatpush1.xpose.msra.mxu0 0.0
    %86 = vmatprep.subr.mxu0 0.0
    %87 = vmatpush1.xpose.msra.mxu0 0.0
    %88 = vmatprep.subr.mxu0 0.0
    %89 = vmatpush1.xpose.msra.mxu0 0.0
    %90 = vmatprep.subr.mxu0 0.0
    %91 = vmatpush1.xpose.msra.mxu0 0.0
    %92 = vmatprep.subr.mxu0 0.0
    %93 = vmatpush1.xpose.msra.mxu0 0.0
    %94 = vmatprep.subr.mxu0 0.0
    %95 = vmatpush1.xpose.msra.mxu0 0.0
    %96 = vmatprep.subr.mxu0 0.0
    %97 = vmatpush1.xpose.msra.mxu0 0.0
    %98 = vmatprep.subr.mxu0 0.0
    %99 = vmatpush1.xpose.msra.mxu0 0.0
    %100 = vmatprep.subr.mxu0 0.0
    %101 = vmatpush1.xpose.msra.mxu0 0.0
    %102 = vmatprep.subr.mxu0 0.0
    %103 = vmatpush1.xpose.msra.mxu0 0.0
    %104 = vmatprep.subr.mxu0 0.0
    %105 = vmatpush1.xpose.msra.mxu0 0.0
    %106 = vmatprep.subr.mxu0 0.0
    %107 = vmatpush1.xpose.msra.mxu0 0.0
    %108 = vmatprep.subr.mxu0 0.0
    %109 = vmatpush1.xpose.msra.mxu0 0.0
    %110 = vmatprep.subr.mxu0 0.0
    %111 = vmatpush1.xpose.msra.mxu0 0.0
    %112 = vmatprep.subr.mxu0 0.0
    %113 = vmatpush1.xpose.msra.mxu0 0.0
    %114 = vmatprep.subr.mxu0 0.0
    %115 = vmatpush1.xpose.msra.mxu0 0.0
    %116 = vmatprep.subr.mxu0 0.0
    %117 = vmatpush1.xpose.msra.mxu0 0.0
    %118 = vmatprep.subr.mxu0 0.0
    %119 = vmatpush1.xpose.msra.mxu0 0.0
    %120 = vmatprep.subr.mxu0 0.0
    %121 = vmatpush1.xpose.msra.mxu0 0.0
    %122 = vmatprep.subr.mxu0 0.0
    %123 = vmatpush1.xpose.msra.mxu0 0.0
    %124 = vmatprep.subr.mxu0 0.0
    %125 = vmatpush1.xpose.msra.mxu0 0.0
    %126 = vmatprep.subr.mxu0 0.0
    %127 = vmatpush1.xpose.msra.mxu0 0.0
    %128 = vmatprep.subr.mxu0 0.0
    %129 = vmatpush1.xpose.msra.mxu0 0.0
    %130 = vmatprep.subr.mxu0 0.0
    %131 = vmatpush1.xpose.msra.mxu0 0.0
    %132 = vmatprep.subr.mxu0 0.0
    %133 = vmatpush1.xpose.msra.mxu0 0.0
    %134 = vmatprep.subr.mxu0 0.0
    %135 = vmatpush1.xpose.msra.mxu0 0.0
    %136 = vmatprep.subr.mxu0 0.0
    %137 = vmatpush1.xpose.msra.mxu0 0.0
    %138 = vmatprep.mubr.f32.mxu0 0.0
    %139 = vmatmul.mubr.f32.gmra.mrb[0].mxu0 1.0
    %v140 = vpop.f32.mrb[0].mxu0
    %v141 = vadd.f32 0.0, %v140
    %v142 = vpop.f32.mrb[0].mxu0
    %143 = vdwg.mxu0
    %v144 = vadd.f32 %v73, %v141
    %vm145 = vcmask 57344
    %146 = vst.msk [vmem:[#allocation5] sm:$0x1] %vm145, %v144
    %v147 = vld [vmem:[#allocation2] sm:$0xff]
    %148 = vmatprep.subr.mxu0 0.0
    %149 = vmatpush1.xpose.msra.mxu0 %v53
    %150 = vmatprep.subr.mxu0 0.0
    %151 = vmatpush1.xpose.msra.mxu0 0.0
    %152 = vmatprep.subr.mxu0 0.0
    %153 = vmatpush1.xpose.msra.mxu0 0.0
    %154 = vmatprep.subr.mxu0 0.0
    %155 = vmatpush1.xpose.msra.mxu0 0.0
    %156 = vmatprep.subr.mxu0 0.0
    %157 = vmatpush1.xpose.msra.mxu0 0.0
    %158 = vmatprep.subr.mxu0 0.0
    %159 = vmatpush1.xpose.msra.mxu0 0.0
    %160 = vmatprep.subr.mxu0 0.0
    %161 = vmatpush1.xpose.msra.mxu0 0.0
    %162 = vmatprep.subr.mxu0 0.0
    %163 = vmatpush1.xpose.msra.mxu0 0.0
    %164 = vmatprep.subr.mxu0 0.0
    %165 = vmatpush1.xpose.msra.mxu0 0.0
    %166 = vmatprep.subr.mxu0 0.0
    %167 = vmatpush1.xpose.msra.mxu0 0.0
    %168 = vmatprep.subr.mxu0 0.0
    %169 = vmatpush1.xpose.msra.mxu0 0.0
    %170 = vmatprep.subr.mxu0 0.0
    %171 = vmatpush1.xpose.msra.mxu0 0.0
    %172 = vmatprep.subr.mxu0 0.0
    %173 = vmatpush1.xpose.msra.mxu0 0.0
    %174 = vmatprep.subr.mxu0 0.0
    %175 = vmatpush1.xpose.msra.mxu0 0.0
    %176 = vmatprep.subr.mxu0 0.0
    %177 = vmatpush1.xpose.msra.mxu0 0.0
    %178 = vmatprep.subr.mxu0 0.0
    %179 = vmatpush1.xpose.msra.mxu0 0.0
    %180 = vmatprep.subr.mxu0 0.0
    %181 = vmatpush1.xpose.msra.mxu0 0.0
    %182 = vmatprep.subr.mxu0 0.0
    %183 = vmatpush1.xpose.msra.mxu0 0.0
    %184 = vmatprep.subr.mxu0 0.0
    %185 = vmatpush1.xpose.msra.mxu0 0.0
    %186 = vmatprep.subr.mxu0 0.0
    %187 = vmatpush1.xpose.msra.mxu0 0.0
    %188 = vmatprep.subr.mxu0 0.0
    %189 = vmatpush1.xpose.msra.mxu0 0.0
    %190 = vmatprep.subr.mxu0 0.0
    %191 = vmatpush1.xpose.msra.mxu0 0.0
    %192 = vmatprep.subr.mxu0 0.0
    %193 = vmatpush1.xpose.msra.mxu0 0.0
    %194 = vmatprep.subr.mxu0 0.0
    %195 = vmatpush1.xpose.msra.mxu0 0.0
    %196 = vmatprep.subr.mxu0 0.0
    %197 = vmatpush1.xpose.msra.mxu0 0.0
    %198 = vmatprep.subr.mxu0 0.0
    %199 = vmatpush1.xpose.msra.mxu0 0.0
    %200 = vmatprep.subr.mxu0 0.0
    %201 = vmatpush1.xpose.msra.mxu0 0.0
    %202 = vmatprep.subr.mxu0 0.0
    %203 = vmatpush1.xpose.msra.mxu0 0.0
    %204 = vmatprep.subr.mxu0 0.0
    %205 = vmatpush1.xpose.msra.mxu0 0.0
    %206 = vmatprep.subr.mxu0 0.0
    %207 = vmatpush1.xpose.msra.mxu0 0.0
    %208 = vmatprep.subr.mxu0 0.0
    %209 = vmatpush1.xpose.msra.mxu0 0.0
    %210 = vmatprep.subr.mxu0 0.0
    %211 = vmatpush1.xpose.msra.mxu0 0.0
    %212 = vmatprep.mubr.f32.mxu0 0.0
    %213 = vmatmul.mubr.f32.gmra.mrb[0].mxu0 %v52
    %v214 = vpop.f32.mrb[0].mxu0
    %v215 = vadd.f32 0.0, %v214
    %v216 = vpop.f32.mrb[0].mxu0
    %217 = vdwg.mxu0
    %v218 = vadd.f32 %v147, %v215
    %vm219 = vcmask 64512
    %220 = vst.msk [vmem:[#allocation2] sm:$0xff] %vm219, %v218
    // Predicated region
    $region26: #{tpu_custom_call.1} parent=1 // pred_check
      %p221 = pneg %p40
    $region27: #{tpu_custom_call.1} parent=1 // pred_check_branch
      %223 = sbr.rel (%p221) target = $region29
    $region28: #{tpu_custom_call.1} parent=1 // pred_region
      %v224 = vld [vmem:[#allocation3] sm:$0xff]
      %v225 = vrsqrt.pop %v224
      %v226 = vmul.f32 %v224, %v225
      %vm227 = vcmp.eq.f32.partialorder %v224, inf
      %v228 = vsel %vm227, %v224, %v226
      %vm229 = vcmp.eq.f32.partialorder %v224, 0.0
      %v230 = vand.u32 %v224, 2147483648
      %v231 = vsel %vm229, %v230, %v228
      %v232 = vmax.f32 %v231, 1e-12
      %v233 = vrcp.pop %v232
      %v234 = vmul.f32 1.0, %v233
      %v235 = vld [vmem:[#allocation4] sm:$0xff]
      %v236 = vrsqrt.pop %v235
      %v237 = vmul.f32 %v235, %v236
      %vm238 = vcmp.eq.f32.partialorder %v235, inf
      %v239 = vsel %vm238, %v235, %v237
      %vm240 = vcmp.eq.f32.partialorder %v235, 0.0
      %v241 = vand.u32 %v235, 2147483648
      %v242 = vsel %vm240, %v241, %v239
      %v243 = vmax.f32 %v242, 1e-12
      %v244 = vrcp.pop %v243
      %v245 = vmul.f32 1.0, %v244
      %v246 = vld [vmem:[#allocation5] sm:$0x1]
      %v247 = vrsqrt.pop %v246
      %v248 = vmul.f32 %v246, %v247
      %vm249 = vcmp.eq.f32.partialorder %v246, inf
      %v250 = vsel %vm249, %v246, %v248
      %vm251 = vcmp.eq.f32.partialorder %v246, 0.0
      %v252 = vand.u32 %v246, 2147483648
      %v253 = vsel %vm251, %v252, %v250
      %v254 = vmax.f32 %v253, 1e-12
      %v255 = vrcp.pop %v254
      %v256 = vmul.f32 1.0, %v255
      %v257 = vld [vmem:[#allocation2] sm:$0xff]
      %259 = vset.pattern.permute.xlu0 0
      %260 = vperm.xlu0 %259, %v234
      %v261 = vpop.permute.xlu0 %260
      %v263 = vmul.f32 %v257, %v261
      %v265 = vlaneseq
      %v266 = vshrl.u32 %v265, 7
      %v267 = vsub.s32 0, %v266
      %v268 = vrot.slane %v256, %v267
      %v270 = vmul.f32 %v263, %v268
      %v271 = vld [vmem:[#allocation6] sm:$0xff]
      %v272 = vmul.f32 %v271, %v234
      %v273 = vmul.f32 %v272, %v245
      %v274 = vmul.f32 %v273, 2.0
      %v275 = vld [vmem:[%s2] sm:$0x3]
      %vm276 = vnez %v275
      %v277 = vmul.f32 %v270, 2.0
      %v278 = vmul.f32 %v277, 1.442695
      %v279 = vpow.pop %v278
      %v280 = vsel %vm276, 16843009, 0
      %v281 = vunpack.c.0.s8 %v280
      %vm282 = vcmp.ne.s32.totalorder %v281, 0
      %v283 = vsel %vm282, %v279, 0.0
      %v284 = vsel %vm219, %v283, 0.0
      %285 = vadd.xlane.f32.xlu0 %v284
      %v286 = vpop.xlane.xlu0 %285
      %v287 = vmul.f32 %v274, 1.442695
      %v288 = vpow.pop %v287
      %v289 = vadd.f32 %v288, %v286
      %v290 = vrcp.pop %v289
      %v291 = vmul.f32 %v288, %v290
      %v292 = vlog2.pop %v291
      %v293 = vmul.f32 %v292, 0.6931472
      %v294 = vsub.f32 0.0, %v293
      %295 = vst.msk [vmem:[%s3] sm:$0xff] %vm59, %v294
    $region29: #{tpu_custom_call.1} parent=1 // pred_fallthru
      _
    // Predicated region
    $region30: #{tpu_custom_call.1} parent=1 // pred_check
      _
    $region31: #{tpu_custom_call.1} parent=1 // pred_check_branch
      %297 = sbr.rel (0) target = $region33
    $region32: #{tpu_custom_call.1} parent=1 // pred_region
      _
    $region33: #{tpu_custom_call.1} parent=1 // pred_fallthru
      _
    // Predicated region
    $region34: #{tpu_custom_call.1} parent=1 // pred_check
      _
    $region35: #{tpu_custom_call.1} parent=1 // pred_check_branch
      %299 = sbr.rel (0) target = $region37
    $region36: #{tpu_custom_call.1} parent=1 // pred_region
      _
    $region37: #{tpu_custom_call.1} parent=1 // pred_fallthru
      _
    %300 = vsyncpa [#allocation8], 1
    %301 = vsyncpa [#allocation10], 1

</llo_original>
